<compile_context>
chip_gen: v7x
topology: tpu7x:2x2x1
jax: 0.10.0
libtpu: 0.0.40
codegen_flags: <defaults>
</compile_context>

<pallas_src>
import functools

import numpy as np
import jax
import jax.numpy as jnp
from jax.experimental import pallas as pl
from jax.experimental.pallas import tpu as pltpu


def _conv_affine_kernel(params_ref, x_ref, o_ref, *, W):
    # params_ref: SMEM f32[10] -> folded 3x3 weights (row-major) + folded bias
    # x_ref, o_ref: VMEM f32[n_t, H*W]  (each row is one flattened image)
    nt, HW = x_ref.shape
    x = x_ref[...]

    # Flat position within each image; column index for left/right borders.
    p = jax.lax.broadcasted_iota(jnp.int32, (nt, HW), 1)
    if (W & (W - 1)) == 0:
        col = p & (W - 1)          # power-of-two W -> cheap AND
    else:
        col = p % W                # TODO(synk): a few extra VPU ops for odd W

    # Horizontal neighbours via XLU lane rotation (circular wrap is masked).
    sh_l = 1 % HW                  # roll(+1)[p]  == x[p-1] == x[h, w-1]
    sh_r = (HW - 1) % HW           # roll(HW-1)   == x[p+1] == x[h, w+1]
    l = jnp.where(col == 0, 0.0, pltpu.roll(x, sh_l, 1))
    r = jnp.where(col == W - 1, 0.0, pltpu.roll(x, sh_r, 1))

    w = params_ref
    s_top = w[0] * l + w[1] * x + w[2] * r            # dh = -1 horizontal sum
    s_bot = w[6] * l + w[7] * x + w[8] * r            # dh = +1 horizontal sum
    acc = (w[3] * l + w[4] * x + w[5] * r) + w[9]     # dh =  0 + folded bias

    # Vertical shift by one image row (W lanes); top/bottom borders masked.
    sh_t = W % HW                  # roll(+W)[p]    == s_top[p - W]
    sh_b = (HW - W) % HW           # roll(HW-W)[p]  == s_bot[p + W]
    acc = acc + jnp.where(p < W, 0.0, pltpu.roll(s_top, sh_t, 1))
    acc = acc + jnp.where(p >= HW - W, 0.0, pltpu.roll(s_bot, sh_b, 1))

    o_ref[...] = acc


def _round_up(x, m):
    return -(-x // m) * m


def _pick_block_rows(N, HW, budget_bytes=2 << 20):
    """Images per block: multiple of 8 (or == N for tiny batches), input block
    under ~budget_bytes, and >= 2 grid steps whenever N allows it (so the
    'parallel' grid axis can shard across v7x's 2 TensorCores)."""
    row_bytes = 4 * HW
    max_rows = max(8, (budget_bytes // row_bytes) // 8 * 8)
    # TODO(synk): for huge images (8 rows already exceed the budget) a single-
    #             image spatial tiling with halo exchange would be needed.
    if N <= 8:
        return N                   # block second-minor == full dim is legal
    target_max = min(max_rows, max(8, _round_up((N + 1) // 2, 8)))
    best = None
    for cand in range(8, target_max + 1, 8):   # exact divisors -> no padding
        if N % cand == 0:
            best = cand
    return best if best is not None else target_max   # caller zero-pads N


def model_forward(x, conv_w, conv_b, lin_w, lin_b):
    """x: (N, 1, H, W) f32 -> (N*H*W,) f32  (matches x.view(-1))."""
    N, C, H, W = x.shape
    assert C == 1
    HW = H * W
    # TODO(synk): if H*W is not a multiple of 128 the output stores become
    #             masked partial stores; pad/pack images for odd sizes.
    xf = x.reshape(N, HW).astype(jnp.float32)        # free layout reinterpret

    lin_w = jnp.asarray(lin_w, jnp.float32).reshape(())
    lin_b = jnp.asarray(lin_b, jnp.float32).reshape(())
    conv_b = jnp.asarray(conv_b, jnp.float32).reshape(())
    # Fold the elementwise affine into the conv: w' = w*lw, b' = b*lw + lb.
    wf = jnp.asarray(conv_w, jnp.float32).reshape(9) * lin_w
    bf = conv_b * lin_w + lin_b
    params = jnp.concatenate([wf, bf.reshape(1)])    # (10,) f32

    n_t = _pick_block_rows(N, HW)
    grid0 = pl.cdiv(N, n_t)
    n_pad = grid0 * n_t
    if n_pad != N:                                   # robust non-divisible N
        xf = jnp.pad(xf, ((0, n_pad - N), (0, 0)))

    kernel = functools.partial(_conv_affine_kernel, W=W)

    out = pl.pallas_call(
        kernel,
        out_shape=jax.ShapeDtypeStruct((n_pad, HW), jnp.float32),
        grid=(grid0,),
        in_specs=[
            pl.BlockSpec(memory_space=pltpu.MemorySpace.SMEM),   # params
            pl.BlockSpec((n_t, HW), lambda i: (i, 0)),           # images
        ],
        out_specs=pl.BlockSpec((n_t, HW), lambda i: (i, 0)),
        compiler_params=pltpu.CompilerParams(
            dimension_semantics=("parallel",),
            vmem_limit_bytes=32 << 20,
        ),
    )(params, xf)

    if n_pad != N:
        out = out[:N]
    return out.reshape(-1)                           # x.view(-1)


def _reference(x, conv_w, conv_b, lin_w, lin_b):
    N, _, H, W = x.shape
    xp = jnp.pad(x[:, 0].astype(jnp.float32), ((0, 0), (1, 1), (1, 1)))
    acc = jnp.zeros((N, H, W), jnp.float32)
    for kh in range(3):
        for kw in range(3):
            acc = acc + conv_w[kh, kw] * xp[:, kh:kh + H, kw:kw + W]
    y = (acc + conv_b) * lin_w + lin_b
    return y.reshape(-1)


if __name__ == "__main__":
    key = jax.random.PRNGKey(0)
    kx, kw, kb, klw, klb = jax.random.split(key, 5)

    # Conv2d(1, 1, 3, stride=1, padding=1): PyTorch-style uniform init bounds.
    conv_bound = 1.0 / np.sqrt(1 * 3 * 3)
    conv_w = jax.random.uniform(kw, (3, 3), jnp.float32, -conv_bound, conv_bound)
    conv_b = jax.random.uniform(kb, (), jnp.float32, -conv_bound, conv_bound)
    lin_w = jax.random.uniform(klw, (), jnp.float32, -1.0, 1.0)
    lin_b = jax.random.uniform(klb, (), jnp.float32, -1.0, 1.0)

    # Main case: N=16 -> two grid steps (exercises pipelining / megacore path).
    N, C, H, W = 16, 1, 16, 16
    x = jax.random.normal(kx, (N, C, H, W), dtype=jnp.float32)
    out = model_forward(x, conv_w, conv_b, lin_w, lin_b)
    jax.block_until_ready(out)
    ref = _reference(x, conv_w, conv_b, lin_w, lin_b)
    assert out.shape == (N * H * W,)
    np.testing.assert_allclose(np.asarray(out), np.asarray(ref),
                               rtol=1e-5, atol=1e-5)

    # Tiny-batch case: single block with n_t == N (original demo shape).
    x2 = jax.random.normal(jax.random.PRNGKey(1), (2, 1, 16, 16), jnp.float32)
    out2 = model_forward(x2, conv_w, conv_b, lin_w, lin_b)
    jax.block_until_ready(out2)
    ref2 = _reference(x2, conv_w, conv_b, lin_w, lin_b)
    np.testing.assert_allclose(np.asarray(out2), np.asarray(ref2),
                               rtol=1e-5, atol=1e-5)

    print("KERNEL_OK")
</pallas_src>

<mosaic_0001>
module attributes {stable_mosaic.version = 11 : i64} {
  func.func @_conv_affine_kernel(%arg0: i32, %arg1: memref<10xf32, #tpu.memory_space<smem>>, %arg2: memref<8x256xf32, #tpu.memory_space<vmem>>, %arg3: memref<8x256xf32, #tpu.memory_space<vmem>>) attributes {dimension_semantics = [#tpu.dimension_semantics<parallel>], iteration_bounds = array<i64: 2>, scalar_prefetch = 0 : i64, scratch_operands = 0 : i64, tpu.core_type = #tpu.core_type<tc>, window_params = [{transform_indices = @transform_0, window_bounds = array<i64: 10>}, {transform_indices = @transform_1, window_bounds = array<i64: 8, 256>}, {transform_indices = @transform_2, window_bounds = array<i64: 8, 256>}]} {
    %c0 = arith.constant 0 : index
    %c0_0 = arith.constant 0 : index
    %0 = vector.load %arg2[%c0, %c0_0] : memref<8x256xf32, #tpu.memory_space<vmem>>, vector<8x256xf32>
    %1 = tpu.iota {dimensions = array<i32: 1>} : vector<8x256xi32>
    %c15_i32 = arith.constant 15 : i32
    %2 = vector.broadcast %c15_i32 : i32 to vector<8x256xi32>
    %3 = arith.andi %1, %2 : vector<8x256xi32>
    %c0_i32 = arith.constant 0 : i32
    %4 = vector.broadcast %c0_i32 : i32 to vector<8x256xi32>
    %5 = arith.cmpi eq, %3, %4 : vector<8x256xi32>
    %c1_i32 = arith.constant 1 : i32
    %6 = tpu.dynamic_rotate %0 by %c1_i32 dim 1 : vector<8x256xf32>, i32 -> vector<8x256xf32>
    %cst = arith.constant 0.000000e+00 : f32
    %7 = vector.broadcast %cst : f32 to vector<8x256xf32>
    %8 = arith.select %5, %7, %6 : vector<8x256xi1>, vector<8x256xf32>
    %c15_i32_1 = arith.constant 15 : i32
    %9 = vector.broadcast %c15_i32_1 : i32 to vector<8x256xi32>
    %10 = arith.cmpi eq, %3, %9 : vector<8x256xi32>
    %c255_i32 = arith.constant 255 : i32
    %11 = tpu.dynamic_rotate %0 by %c255_i32 dim 1 : vector<8x256xf32>, i32 -> vector<8x256xf32>
    %cst_2 = arith.constant 0.000000e+00 : f32
    %12 = vector.broadcast %cst_2 : f32 to vector<8x256xf32>
    %13 = arith.select %10, %12, %11 : vector<8x256xi1>, vector<8x256xf32>
    %c0_3 = arith.constant 0 : index
    %14 = memref.load %arg1[%c0_3] : memref<10xf32, #tpu.memory_space<smem>>
    %15 = vector.broadcast %14 : f32 to vector<8x256xf32>
    %16 = arith.mulf %15, %8 : vector<8x256xf32>
    %c1 = arith.constant 1 : index
    %17 = memref.load %arg1[%c1] : memref<10xf32, #tpu.memory_space<smem>>
    %18 = vector.broadcast %17 : f32 to vector<8x256xf32>
    %19 = arith.mulf %18, %0 : vector<8x256xf32>
    %20 = arith.addf %16, %19 : vector<8x256xf32>
    %c2 = arith.constant 2 : index
    %21 = memref.load %arg1[%c2] : memref<10xf32, #tpu.memory_space<smem>>
    %22 = vector.broadcast %21 : f32 to vector<8x256xf32>
    %23 = arith.mulf %22, %13 : vector<8x256xf32>
    %24 = arith.addf %20, %23 : vector<8x256xf32>
    %c6 = arith.constant 6 : index
    %25 = memref.load %arg1[%c6] : memref<10xf32, #tpu.memory_space<smem>>
    %26 = vector.broadcast %25 : f32 to vector<8x256xf32>
    %27 = arith.mulf %26, %8 : vector<8x256xf32>
    %c7 = arith.constant 7 : index
    %28 = memref.load %arg1[%c7] : memref<10xf32, #tpu.memory_space<smem>>
    %29 = vector.broadcast %28 : f32 to vector<8x256xf32>
    %30 = arith.mulf %29, %0 : vector<8x256xf32>
    %31 = arith.addf %27, %30 : vector<8x256xf32>
    %c8 = arith.constant 8 : index
    %32 = memref.load %arg1[%c8] : memref<10xf32, #tpu.memory_space<smem>>
    %33 = vector.broadcast %32 : f32 to vector<8x256xf32>
    %34 = arith.mulf %33, %13 : vector<8x256xf32>
    %35 = arith.addf %31, %34 : vector<8x256xf32>
    %c3 = arith.constant 3 : index
    %36 = memref.load %arg1[%c3] : memref<10xf32, #tpu.memory_space<smem>>
    %37 = vector.broadcast %36 : f32 to vector<8x256xf32>
    %38 = arith.mulf %37, %8 : vector<8x256xf32>
    %c4 = arith.constant 4 : index
    %39 = memref.load %arg1[%c4] : memref<10xf32, #tpu.memory_space<smem>>
    %40 = vector.broadcast %39 : f32 to vector<8x256xf32>
    %41 = arith.mulf %40, %0 : vector<8x256xf32>
    %42 = arith.addf %38, %41 : vector<8x256xf32>
    %c5 = arith.constant 5 : index
    %43 = memref.load %arg1[%c5] : memref<10xf32, #tpu.memory_space<smem>>
    %44 = vector.broadcast %43 : f32 to vector<8x256xf32>
    %45 = arith.mulf %44, %13 : vector<8x256xf32>
    %46 = arith.addf %42, %45 : vector<8x256xf32>
    %c9 = arith.constant 9 : index
    %47 = memref.load %arg1[%c9] : memref<10xf32, #tpu.memory_space<smem>>
    %48 = vector.broadcast %47 : f32 to vector<8x256xf32>
    %49 = arith.addf %46, %48 : vector<8x256xf32>
    %c16_i32 = arith.constant 16 : i32
    %50 = vector.broadcast %c16_i32 : i32 to vector<8x256xi32>
    %51 = arith.cmpi slt, %1, %50 : vector<8x256xi32>
    %c16_i32_4 = arith.constant 16 : i32
    %52 = tpu.dynamic_rotate %24 by %c16_i32_4 dim 1 : vector<8x256xf32>, i32 -> vector<8x256xf32>
    %cst_5 = arith.constant 0.000000e+00 : f32
    %53 = vector.broadcast %cst_5 : f32 to vector<8x256xf32>
    %54 = arith.select %51, %53, %52 : vector<8x256xi1>, vector<8x256xf32>
    %55 = arith.addf %49, %54 : vector<8x256xf32>
    %c240_i32 = arith.constant 240 : i32
    %56 = vector.broadcast %c240_i32 : i32 to vector<8x256xi32>
    %57 = arith.cmpi sge, %1, %56 : vector<8x256xi32>
    %c240_i32_6 = arith.constant 240 : i32
    %58 = tpu.dynamic_rotate %35 by %c240_i32_6 dim 1 : vector<8x256xf32>, i32 -> vector<8x256xf32>
    %cst_7 = arith.constant 0.000000e+00 : f32
    %59 = vector.broadcast %cst_7 : f32 to vector<8x256xf32>
    %60 = arith.select %57, %59, %58 : vector<8x256xi1>, vector<8x256xf32>
    %61 = arith.addf %55, %60 : vector<8x256xf32>
    %c0_8 = arith.constant 0 : index
    %c0_9 = arith.constant 0 : index
    %62 = vector.load %arg3[%c0_8, %c0_9] : memref<8x256xf32, #tpu.memory_space<vmem>>, vector<8x256xf32>
    tpu.vector_store %arg3[%c0_8, %c0_9], %61 {strides = array<i32>} : memref<8x256xf32, #tpu.memory_space<vmem>>, vector<8x256xf32>,
    return
  }
  func.func @transform_0(%arg0: i32) -> i32 {
    %c0_i32 = arith.constant 0 : i32
    %c0_i32_0 = arith.constant 0 : i32
    return %c0_i32 : i32
  }
  func.func @transform_1(%arg0: i32) -> (i32, i32) {
    %c0_i32 = arith.constant 0 : i32
    %c0_i32_0 = arith.constant 0 : i32
    return %arg0, %c0_i32 : i32, i32
  }
  func.func @transform_2(%arg0: i32) -> (i32, i32) {
    %c0_i32 = arith.constant 0 : i32
    %c0_i32_0 = arith.constant 0 : i32
    return %arg0, %c0_i32 : i32, i32
  }
}

</mosaic_0001>

<llo_original>
// kernel: tpu_custom_call.1
$region0: #{tpu_custom_call.1}
  #allocation0 [shape = 'u32[]', space=smem, size = 0x4, offset = 0x4, fixed_abs, tag = 'smem constant byte address 0x4 - core index']
  #allocation1 [shape = 'u32[144,128]{1,0:T(1,128)}', space=vmem, size = 0x12000, scoped, tag = 'internal scratch']
  %s0 = inlined_call_operand.hbm [shape: f32[10], index: 0, kind: input, shape index: {}]
  %s1 = inlined_call_operand.hbm [shape: f32[16,256], index: 1, kind: input, shape index: {}]
  %s2 = inlined_call_operand.hbm [shape: f32[16,256], index: 2, kind: output, shape index: {}]
  %s3 = sld [smem:[#allocation0]]
  $region49: #{tpu_custom_call.1} parent=0
    _
  %s5 = ssub.s32 1, %s3
  %s6 = scalar_select 0, %s5, %s3
  $region1: #{tpu_custom_call.1} parent=0
    #allocation2 [shape = 'u8[512]{0}', space=smem, size = 0x200, scoped, tag = 'input window, operand 0, single buffered']
    #allocation3 [shape = 's32[2]{0}', space=sflag, size = 0x8, scoped, tag = 'scoped memory for tpu_custom_call.1']
    #allocation4 [shape = 's32[2]{0}', space=sflag, size = 0x8, scoped, tag = 'scoped memory for tpu_custom_call.1']
    #allocation5 [shape = 's32[2]{0}', space=sflag, size = 0x8, scoped, tag = 'scoped memory for tpu_custom_call.1']
    #allocation6 [shape = 'u8[16384]{0}', space=vmem, size = 0x4000, scoped, tag = 'input window, operand 1']
    #allocation7 [shape = 'u8[16384]{0}', space=vmem, size = 0x4000, scoped, tag = 'output window, operand 0']
    %7 = vsyncpa [#allocation5], 0
    %8 = vsyncpa [#allocation3], 0
    %s9 = scalar_lea.sflag [#allocation3], 1
    %10 = vsyncpa %s9, 0
    %11 = vsyncpa [#allocation4], 0
    %s12 = scalar_lea.sflag [#allocation4], 1
    %13 = vsyncpa %s12, 0
    loop: start=0, step=1, limit=4
    $region2: #{tpu_custom_call.1} parent=1 // loop_pre_header
      _
    $region3: #{tpu_custom_call.1} parent=1 // loop_header
      %s15 = sphi 0, %s19
      %p16 = scmp.ge.s32.totalorder %s15, 4
      %s23 = sphi 0, %s23
      %s25 = sphi 0, %s23
      %s26 = sphi 0, %s25
      %s40 = sphi 0, %s26
      %s46 = sphi 0, %s48
      %s49 = sphi 0, %s46
      %s50 = sphi 0, %s49
      %s66 = sphi 0, %s50
      %s72 = sphi 0, %s74
      %s75 = sphi 0, %s72
      %s76 = sphi 0, %s75
      %s92 = sphi 0, %s76
    $region4: #{tpu_custom_call.1} parent=1 // loop_header_branch
      %18 = sbr.rel (%p16) target = $region8
    $region5: #{tpu_custom_call.1} parent=1 // loop_body
      %s20 = ssub.s32 %s15, 1
      %s21 = ssub.s32 %s15, 2
      %s22 = sadd.s32 %s15, 1
      %s24 = sadd.s32 %s23, 1
      %p27 = scmp.eq.s32.totalorder %s15, 1
      %p28 = scmp.ne.s32.totalorder %s23, %s25
      %p29 = scmp.eq.s32.totalorder %s15, 0
      %p30 = por %p28, %p29
      %p31 = scmp.ne.s32.totalorder %s23, %s25
      %p32 = scmp.eq.s32.totalorder %s20, 1
      %p33 = por %p31, %p32
      %p34 = scmp.ne.s32.totalorder %s25, %s26
      %p35 = scmp.eq.s32.totalorder %s20, 0
      %p36 = por %p34, %p35
      %p37 = scmp.ne.s32.totalorder %s25, %s26
      %p38 = scmp.eq.s32.totalorder %s21, 1
      %p39 = por %p37, %p38
      %p41 = scmp.ne.s32.totalorder %s26, %s40
      %p42 = scmp.eq.s32.totalorder %s21, 0
      %p43 = por %p41, %p42
      %s44 = ssub.s32 %s15, %s22
      %p45 = scmp.eq.s32.totalorder %s44, 0
      %s47 = sadd.s32 %s46, 1
      %s48 = scalar_select %p45, %s46, %s47
      %p51 = pneg %p45
      %p52 = scmp.eq.s32.totalorder %s15, 1
      %p53 = por %p51, %p52
      %p54 = scmp.ne.s32.totalorder %s46, %s49
      %p55 = scmp.eq.s32.totalorder %s15, 0
      %p56 = por %p54, %p55
      %p57 = scmp.ne.s32.totalorder %s46, %s49
      %p58 = scmp.eq.s32.totalorder %s20, 1
      %p59 = por %p57, %p58
      %p60 = scmp.ne.s32.totalorder %s49, %s50
      %p61 = scmp.eq.s32.totalorder %s20, 0
      %p62 = por %p60, %p61
      %p63 = scmp.ne.s32.totalorder %s49, %s50
      %p64 = scmp.eq.s32.totalorder %s21, 1
      %p65 = por %p63, %p64
      %p67 = scmp.ne.s32.totalorder %s50, %s66
      %p68 = scmp.eq.s32.totalorder %s21, 0
      %p69 = por %p67, %p68
      %s70 = ssub.s32 %s15, %s22
      %p71 = scmp.eq.s32.totalorder %s70, 0
      %s73 = sadd.s32 %s72, 1
      %s74 = scalar_select %p71, %s72, %s73
      %p77 = pneg %p71
      %p78 = scmp.eq.s32.totalorder %s15, 1
      %p79 = por %p77, %p78
      %p80 = scmp.ne.s32.totalorder %s72, %s75
      %p81 = scmp.eq.s32.totalorder %s15, 0
      %p82 = por %p80, %p81
      %p83 = scmp.ne.s32.totalorder %s72, %s75
      %p84 = scmp.eq.s32.totalorder %s20, 1
      %p85 = por %p83, %p84
      %p86 = scmp.ne.s32.totalorder %s75, %s76
      %p87 = scmp.eq.s32.totalorder %s20, 0
      %p88 = por %p86, %p87
      %p89 = scmp.ne.s32.totalorder %s75, %s76
      %p90 = scmp.eq.s32.totalorder %s21, 1
      %p91 = por %p89, %p90
      %p93 = scmp.ne.s32.totalorder %s76, %s92
      %p94 = scmp.eq.s32.totalorder %s21, 0
      %p95 = por %p93, %p94
      %p96 = scmp.le.s32.totalorder 1, %s15
      %p97 = scmp.lt.s32.totalorder %s15, 3
      %p98 = pnand %p96, %p97
      %p99 = pneg %p98
      // Predicated region
      $region9: #{tpu_custom_call.1} parent=5 // pred_check
        _
      $region10: #{tpu_custom_call.1} parent=5 // pred_check_branch
        %101 = sbr.rel (%p98) target = $region12
      $region11: #{tpu_custom_call.1} parent=5 // pred_region
        %s102 = ssub.s32 %s15, 1
        // Predicated region
        $region13: #{tpu_custom_call.1} parent=11 // pred_check
          %p103 = pneg %p36
        $region14: #{tpu_custom_call.1} parent=11 // pred_check_branch
          %105 = sbr.rel (%p103) target = $region16
        $region15: #{tpu_custom_call.1} parent=11 // pred_region
          %s107 = ssub.s32 16, 16
          %108 = vsyncadd [#allocation5], %s107
          %111 = dma.hbm_to_smem %s0, 16, [#allocation2], [#allocation5]
        $region16: #{tpu_custom_call.1} parent=11 // pred_fallthru
          _
      $region12: #{tpu_custom_call.1} parent=5 // pred_fallthru
        _
      %p112 = scmp.lt.s32.totalorder %s15, 2
      // Predicated region
      $region17: #{tpu_custom_call.1} parent=5 // pred_check
        %p113 = pneg %p112
      $region18: #{tpu_custom_call.1} parent=5 // pred_check_branch
        %115 = sbr.rel (%p113) target = $region20
      $region19: #{tpu_custom_call.1} parent=5 // pred_region
        // Predicated region
        $region21: #{tpu_custom_call.1} parent=19 // pred_check
          %p116 = pneg %p56
        $region22: #{tpu_custom_call.1} parent=19 // pred_check_branch
          %118 = sbr.rel (%p116) target = $region24
        $region23: #{tpu_custom_call.1} parent=19 // pred_region
          %s119 = sand.u32 %s46, 1
          %s120 = scalar_lea.sflag [#allocation3], %s119
          %s121 = sand.u32 %s46, 1
          %s122 = smul.addr %s121, 16
          %s123 = scalar_lea.vmem [#allocation6], %s122
          %s125 = ssub.s32 256, 256
          %126 = vsyncadd %s120, %s125
          %s127 = smul.addr %s15, 2
          %s128 = smul.addr %s127, 128
          %s129 = scalar_lea.hbm %s1, %s128
          %s131 = sshll.u32 %s123, 4
          %s132 = int_to_ptr.vmem [resolvable:$true] %s131
          %134 = dma.hbm_to_vmem [thread:$0]  %s129, 256, %s132, %s120
        $region24: #{tpu_custom_call.1} parent=19 // pred_fallthru
          _
      $region20: #{tpu_custom_call.1} parent=5 // pred_fallthru
        _
      %p135 = scmp.le.s32.totalorder 1, %s15
      %p136 = scmp.lt.s32.totalorder %s15, 3
      %p137 = pnand %p135, %p136
      %p138 = pneg %p137
      // Predicated region
      $region25: #{tpu_custom_call.1} parent=5 // pred_check
        _
      $region26: #{tpu_custom_call.1} parent=5 // pred_check_branch
        %140 = sbr.rel (%p137) target = $region28
      $region27: #{tpu_custom_call.1} parent=5 // pred_region
        %s141 = ssub.s32 %s15, 1
        // Predicated region
        $region29: #{tpu_custom_call.1} parent=27 // pred_check
          %p142 = pneg %p36
        $region30: #{tpu_custom_call.1} parent=27 // pred_check_branch
          %144 = sbr.rel (%p142) target = $region32
        $region31: #{tpu_custom_call.1} parent=27 // pred_region
          %145 = dma.done [#allocation5], 16
        $region32: #{tpu_custom_call.1} parent=27 // pred_fallthru
          _
        %s146 = sand.u32 %s49, 1
        %s147 = scalar_lea.sflag [#allocation3], %s146
        %s148 = sand.u32 %s49, 1
        %s149 = smul.addr %s148, 16
        %s150 = scalar_lea.vmem [#allocation6], %s149
        // Predicated region
        $region33: #{tpu_custom_call.1} parent=27 // pred_check
          %p151 = pneg %p62
        $region34: #{tpu_custom_call.1} parent=27 // pred_check_branch
          %153 = sbr.rel (%p151) target = $region36
        $region35: #{tpu_custom_call.1} parent=27 // pred_region
          %154 = dma.done %s147, 256
        $region36: #{tpu_custom_call.1} parent=27 // pred_fallthru
          _
        %155 = sfence
        %p156 = pneg %p36
        %p157 = pneg %p33
        %s158 = sand.u32 %s49, 1
        %s159 = scalar_lea.sflag [#allocation3], %s158
        %s160 = sand.u32 %s49, 1
        %s161 = smul.addr %s160, 16
        %s162 = scalar_lea.vmem [#allocation6], %s161
        %p163 = pneg %p62
        %p164 = pneg %p59
        %p165 = pneg %p88
        %p166 = pneg %p85
        %s167 = sand.u32 %s75, 1
        %s168 = scalar_lea.sflag [#allocation4], %s167
        %s169 = sand.u32 %s75, 1
        %s170 = smul.addr %s169, 16
        %s171 = scalar_lea.vmem [#allocation7], %s170
        %v172 = vld [vmem:[%s150] sm:$0xff]
        %v173 = vld [vmem:[%s150 + $0x8] sm:$0xff]
        %v174 = vlaneseq
        %v175 = vand.u32 %v174, 127
        %v176 = vadd.s32 %v175, 128
        %v177 = vand.u32 %v175, 15
        %v178 = vand.u32 %v176, 15
        %vm179 = vcmp.eq.s32.totalorder %v177, 0
        %vm180 = vcmp.eq.s32.totalorder %v178, 0
        %181 = vrot.lane.b32.xlu0 %v172, 1
        %v182 = vpop.permute.xlu0 %181
        %183 = vrot.lane.b32.xlu0 %v173, 1
        %v184 = vpop.permute.xlu0 %183
        %vm185 = vcmp.lt.s32.totalorder %v175, 1
        %v186 = vsel %vm185, %v182, %v184
        %v187 = vsel %vm185, %v184, %v182
        %v188 = vsel %vm179, 0.0, %v187
        %v189 = vsel %vm180, 0.0, %v186
        %vm190 = vcmp.eq.s32.totalorder %v177, 15
        %vm191 = vcmp.eq.s32.totalorder %v178, 15
        %192 = vrot.lane.b32.xlu0 %v172, 127
        %v193 = vpop.permute.xlu0 %192
        %194 = vrot.lane.b32.xlu0 %v173, 127
        %v195 = vpop.permute.xlu0 %194
        %vm196 = vcmp.lt.s32.totalorder %v175, 127
        %v197 = vsel %vm196, %v193, %v195
        %v198 = vsel %vm196, %v195, %v193
        %v199 = vsel %vm190, 0.0, %v197
        %v200 = vsel %vm191, 0.0, %v198
        %s201 = sld [smem:[#allocation2]]
        %v202 = vstv %s201
        %v203 = vmul.f32 %v202, %v188
        %v204 = vmul.f32 %v202, %v189
        %s205 = sld [smem:[#allocation2 + $0x1]]
        %v206 = vstv %s205
        %v207 = vmul.f32 %v206, %v172
        %v208 = vmul.f32 %v206, %v173
        %v209 = vadd.f32 %v203, %v207
        %v210 = vadd.f32 %v204, %v208
        %s211 = sld [smem:[#allocation2 + $0x2]]
        %v212 = vstv %s211
        %v213 = vmul.f32 %v212, %v199
        %v214 = vmul.f32 %v212, %v200
        %v215 = vadd.f32 %v209, %v213
        %v216 = vadd.f32 %v210, %v214
        %s217 = sld [smem:[#allocation2 + $0x6]]
        %v218 = vstv %s217
        %v219 = vmul.f32 %v218, %v188
        %v220 = vmul.f32 %v218, %v189
        %s221 = sld [smem:[#allocation2 + $0x7]]
        %v222 = vstv %s221
        %v223 = vmul.f32 %v222, %v172
        %v224 = vmul.f32 %v222, %v173
        %v225 = vadd.f32 %v219, %v223
        %v226 = vadd.f32 %v220, %v224
        %s227 = sld [smem:[#allocation2 + $0x8]]
        %v228 = vstv %s227
        %v229 = vmul.f32 %v228, %v199
        %v230 = vmul.f32 %v228, %v200
        %v231 = vadd.f32 %v225, %v229
        %v232 = vadd.f32 %v226, %v230
        %s233 = sld [smem:[#allocation2 + $0x3]]
        %v234 = vstv %s233
        %v235 = vmul.f32 %v234, %v188
        %v236 = vmul.f32 %v234, %v189
        %s237 = sld [smem:[#allocation2 + $0x4]]
        %v238 = vstv %s237
        %v239 = vmul.f32 %v238, %v172
        %v240 = vmul.f32 %v238, %v173
        %v241 = vadd.f32 %v235, %v239
        %v242 = vadd.f32 %v236, %v240
        %s243 = sld [smem:[#allocation2 + $0x5]]
        %v244 = vstv %s243
        %v245 = vmul.f32 %v244, %v199
        %v246 = vmul.f32 %v244, %v200
        %v247 = vadd.f32 %v241, %v245
        %v248 = vadd.f32 %v242, %v246
        %s249 = sld [smem:[#allocation2 + $0x9]]
        %v250 = vstv %s249
        %v251 = vadd.f32 %v247, %v250
        %v252 = vadd.f32 %v248, %v250
        %vm253 = vcmp.lt.s32.totalorder %v175, 16
        %vm254 = vcmp.lt.s32.totalorder %v176, 16
        %255 = vrot.lane.b32.xlu0 %v215, 16
        %v256 = vpop.permute.xlu0 %255
        %257 = vrot.lane.b32.xlu0 %v216, 16
        %v258 = vpop.permute.xlu0 %257
        %v259 = vsel %vm253, %v256, %v258
        %v260 = vsel %vm253, %v258, %v256
        %v261 = vsel %vm253, 0.0, %v260
        %v262 = vsel %vm254, 0.0, %v259
        %v263 = vadd.f32 %v251, %v261
        %v264 = vadd.f32 %v252, %v262
        %vm265 = vcmp.ge.s32.totalorder %v175, 240
        %vm266 = vcmp.ge.s32.totalorder %v176, 240
        %267 = vrot.lane.b32.xlu0 %v231, 112
        %v268 = vpop.permute.xlu0 %267
        %269 = vrot.lane.b32.xlu0 %v232, 112
        %v270 = vpop.permute.xlu0 %269
        %vm271 = vcmp.lt.s32.totalorder %v175, 112
        %v272 = vsel %vm271, %v268, %v270
        %v273 = vsel %vm271, %v270, %v268
        %v274 = vsel %vm265, 0.0, %v272
        %v275 = vsel %vm266, 0.0, %v273
        %v276 = vadd.f32 %v263, %v274
        %v277 = vadd.f32 %v264, %v275
        %278 = vst [vmem:[%s171] sm:$0xff] %v276
        %279 = vst [vmem:[%s171 + $0x8] sm:$0xff] %v277
        %s280 = sand.u32 %s75, 1
        %s281 = scalar_lea.sflag [#allocation4], %s280
        %s282 = sand.u32 %s75, 1
        %s283 = smul.addr %s282, 16
        %s284 = scalar_lea.vmem [#allocation7], %s283
        // Predicated region
        $region37: #{tpu_custom_call.1} parent=27 // pred_check
          %p285 = pneg %p85
        $region38: #{tpu_custom_call.1} parent=27 // pred_check_branch
          %287 = sbr.rel (%p285) target = $region40
        $region39: #{tpu_custom_call.1} parent=27 // pred_region
          %s289 = ssub.s32 256, 256
          %290 = vsyncadd %s281, %s289
          %s291 = smul.addr %s20, 2
          %s292 = smul.addr %s291, 128
          %s293 = scalar_lea.hbm %s2, %s292
          %s295 = sshll.u32 %s284, 4
          %s296 = int_to_ptr.vmem [resolvable:$true] %s295
          %298 = dma.vmem_to_hbm [thread:$0]  %s296, 256, %s293, %s281
        $region40: #{tpu_custom_call.1} parent=27 // pred_fallthru
          _
      $region28: #{tpu_custom_call.1} parent=5 // pred_fallthru
        _
      %p299 = scmp.le.s32.totalorder 2, %s15
      // Predicated region
      $region41: #{tpu_custom_call.1} parent=5 // pred_check
        %p300 = pneg %p299
      $region42: #{tpu_custom_call.1} parent=5 // pred_check_branch
        %302 = sbr.rel (%p300) target = $region44
      $region43: #{tpu_custom_call.1} parent=5 // pred_region
        %s303 = ssub.s32 %s15, 2
        // Predicated region
        $region45: #{tpu_custom_call.1} parent=43 // pred_check
          %p304 = pneg %p91
        $region46: #{tpu_custom_call.1} parent=43 // pred_check_branch
          %306 = sbr.rel (%p304) target = $region48
        $region47: #{tpu_custom_call.1} parent=43 // pred_region
          %s307 = sand.u32 %s76, 1
          %s308 = scalar_lea.sflag [#allocation4], %s307
          %s309 = sand.u32 %s76, 1
          %s310 = smul.addr %s309, 16
          %s311 = scalar_lea.vmem [#allocation7], %s310
          %312 = dma.done %s308, 256
        $region48: #{tpu_custom_call.1} parent=43 // pred_fallthru
          _
      $region44: #{tpu_custom_call.1} parent=5 // pred_fallthru
        _
    $region6: #{tpu_custom_call.1} parent=1 // loop_footer
      %s19 = sadd.s32 1, %s15
    $region7: #{tpu_custom_call.1} parent=1 // loop_footer_branch
      %14 = sbr.rel target = $region3
    $region8: #{tpu_custom_call.1} parent=1 // loop_exit
      _
    %313 = vsyncpa [#allocation3], 1
    %s314 = scalar_lea.sflag [#allocation3], 1
    %315 = vsyncpa %s314, 1
    %316 = vsyncpa [#allocation4], 1
    %s317 = scalar_lea.sflag [#allocation4], 1
    %318 = vsyncpa %s317, 1
    %319 = vsyncpa [#allocation5], 1
    %s320 = scalar_lea.sflag [#allocation5], 1
    %321 = vsyncpa %s320, 1

</llo_original>
